<compile_context>
chip_gen: v7x
topology: tpu7x:2x2x1
jax: 0.10.0
libtpu: 0.0.40
codegen_flags: <defaults>
</compile_context>

<pallas_src>
import functools

import jax
import jax.numpy as jnp
from jax.experimental import pallas as pl
from jax.experimental.pallas import tpu as pltpu


def _round_up(x, m):
    return ((x + m - 1) // m) * m


# ----------------------------------------------------------------------------
# Fused multi-layer GCN kernel
#   per (layer l, row-tile r):
#     h_prev  = scratch slot (l % 2)            (slot 0 seeded with input feat)
#     rst_v   = h_prev[rows_r] @ W_v[l]                      (bf16 MXU, f32 acc)
#     rst_u   = (adj[rows_r, :] @ h_prev) @ W_u[l]           (bf16 MXU, f32 acc)
#     h_new_r = relu(rst_v + norm[rows_r] * rst_u + bias[l])  (f32 epilogue)
#     scratch slot ((l+1) % 2)[rows_r] = bf16(h_new_r)
#     if l == last: out[rows_r] = h_new_r        (resident block, 1 writeback)
# ----------------------------------------------------------------------------
def gcn_stack_kernel(adj_ref, feat_hbm, norm_ref, wu_ref, wv_ref, bias_ref,
                     out_ref, h_ref, copy_sem, *, tm, n_layers):
    l = pl.program_id(0)          # layer index (outer, sequential)
    r = pl.program_id(1)          # destination-row tile index (inner)
    row0 = pl.multiple_of(r * tm, tm)

    # One-time seed of ping-pong slot 0 with the (bf16, zero-padded) features.
    @pl.when(jnp.logical_and(l == 0, r == 0))
    def _seed():
        cp = pltpu.make_async_copy(feat_hbm, h_ref.at[0], copy_sem)
        cp.start()
        cp.wait()

    rd = l % 2            # slot holding layer-l input
    wr = (l + 1) % 2      # slot receiving layer-l output

    h_all = h_ref[rd]                             # [N_pad, F_pad] bf16 (sources)
    h_rows = h_ref[rd, pl.ds(row0, tm), :]        # [TM, F_pad]    bf16 (dst tile)

    w_u = wu_ref[0]                               # [F_pad, F_pad] bf16
    w_v = wv_ref[0]                               # [F_pad, F_pad] bf16
    bias = bias_ref[0]                            # [1, F_pad]     f32

    # Self term: h_i @ W_v
    rst_v = jnp.dot(h_rows, w_v, preferred_element_type=jnp.float32)

    # Aggregate then project: (adj @ h) @ W_u -- mathematically identical to
    # the project-before-aggregate branch of the reference module.
    adj = adj_ref[...].astype(jnp.bfloat16)       # int8 0/1 -> exact bf16
    agg = jnp.dot(adj, h_all, preferred_element_type=jnp.float32)     # [TM, F_pad]
    rst_u = jnp.dot(agg.astype(jnp.bfloat16), w_u,
                    preferred_element_type=jnp.float32)

    # Epilogue in f32; cast only at the stores.
    out = jnp.maximum(rst_v + norm_ref[...] * rst_u + bias, 0.0)      # ReLU

    # Next layer's input stays resident in VMEM (bf16 ping-pong).
    h_ref[wr, pl.ds(row0, tm), :] = out.astype(jnp.bfloat16)

    # Final layer: write rows into the resident f32 output block (single HBM
    # writeback at the very end of the kernel, not per layer).
    @pl.when(l == n_layers - 1)
    def _emit():
        out_ref[pl.ds(row0, tm), :] = out


# ----------------------------------------------------------------------------
# Wrapper: pad, stack weights, launch the fused kernel.
# ----------------------------------------------------------------------------
@jax.jit
def gcn_forward(adj, feat, params):
    # TODO(synk): nn.Dropout between layers is identity in eval mode; training-
    # mode random dropout is not implemented here.
    n, in_feats = feat.shape
    n_layers = len(params)
    out_feats = params[-1]["w_u"].shape[1]

    dims = [in_feats] + [p["w_u"].shape[1] for p in params]
    f_pad = _round_up(max(dims), 128)                 # lane-dense features
    n_pad = _round_up(n, 128)                         # lane-dense adj K dim
    tm = 256 if n_pad % 256 == 0 else 128             # dst-row tile (divides n_pad)
    n_tiles = n_pad // tm

    # Graph tensors (padded).  Norm is graph-invariant: compute it once here.
    adj_p = jnp.zeros((n_pad, n_pad), jnp.float32).at[:n, :n].set(adj)
    degs = jnp.sum(adj_p, axis=1, keepdims=True)
    norm = 1.0 / jnp.maximum(degs, 1.0)               # [N_pad, 1] f32
    adj_i8 = adj_p.astype(jnp.int8)                   # 0/1 -> exact; halves HBM

    feat_bf = jnp.zeros((n_pad, f_pad), jnp.bfloat16).at[:n, :in_feats].set(
        feat.astype(jnp.bfloat16))

    # Stack per-layer weights into padded [L, F_pad, F_pad] bf16 / [L,1,F_pad] f32.
    wu = jnp.zeros((n_layers, f_pad, f_pad), jnp.bfloat16)
    wv = jnp.zeros((n_layers, f_pad, f_pad), jnp.bfloat16)
    bias = jnp.zeros((n_layers, 1, f_pad), jnp.float32)
    for i, p in enumerate(params):
        fi, fo = p["w_u"].shape
        wu = wu.at[i, :fi, :fo].set(p["w_u"].astype(jnp.bfloat16))
        wv = wv.at[i, :fi, :fo].set(p["w_v"].astype(jnp.bfloat16))
        bias = bias.at[i, 0, :fo].set(p["bias"])

    # Explicit VMEM budget (defaults: 16 MiB scoped v5e / 32 MiB v6e,v7x).
    vmem_bytes = (
        2 * n_pad * f_pad * 2          # ping-pong bf16 activation scratch
        + 2 * tm * n_pad * 1           # adj int8 double buffer
        + n_pad * f_pad * 4            # resident f32 output block
        + 2 * 2 * f_pad * f_pad * 2    # W_u / W_v bf16 double buffers
        + 2 * tm * 128 * 4             # norm (lane-padded) double buffer
        + 2 * 8 * f_pad * 4            # bias double buffer
        + (4 << 20)                    # headroom for compiler temporaries
    )

    kernel = functools.partial(gcn_stack_kernel, tm=tm, n_layers=n_layers)

    out = pl.pallas_call(
        kernel,
        out_shape=jax.ShapeDtypeStruct((n_pad, f_pad), jnp.float32),
        grid=(n_layers, n_tiles),
        in_specs=[
            pl.BlockSpec((tm, n_pad), lambda l, r: (r, 0)),            # adj (int8)
            pl.BlockSpec(memory_space=pl.ANY),                         # feat (HBM)
            pl.BlockSpec((tm, 1), lambda l, r: (r, 0)),                # 1/deg
            pl.BlockSpec((1, f_pad, f_pad), lambda l, r: (l, 0, 0)),   # W_u stack
            pl.BlockSpec((1, f_pad, f_pad), lambda l, r: (l, 0, 0)),   # W_v stack
            pl.BlockSpec((1, 1, f_pad), lambda l, r: (l, 0, 0)),       # bias stack
        ],
        out_specs=pl.BlockSpec((n_pad, f_pad), lambda l, r: (0, 0)),   # resident
        scratch_shapes=[
            pltpu.VMEM((2, n_pad, f_pad), jnp.bfloat16),               # ping-pong h
            pltpu.SemaphoreType.DMA,                                   # feat seed DMA
        ],
        compiler_params=pltpu.CompilerParams(
            dimension_semantics=("arbitrary", "arbitrary"),
            vmem_limit_bytes=int(vmem_bytes)),
    )(adj_i8, feat_bf, norm, wu, wv, bias)

    return out[:n, :out_feats]


# ----------------------------------------------------------------------------
# Pure-JAX reference (f32 end-to-end) for a sanity check.
# ----------------------------------------------------------------------------
def gcn_reference(adj, feat, params):
    degs = jnp.sum(adj, axis=1, keepdims=True)
    norm = 1.0 / jnp.maximum(degs, 1.0)
    h = feat
    for p in params:
        rst_v = h @ p["w_v"]
        rst_u = (adj @ h) @ p["w_u"]
        h = jax.nn.relu(rst_v + norm * rst_u + p["bias"])
    return h


# ----------------------------------------------------------------------------
# Parameter setup (deterministic, mirrors GCN.__init__ / reset_parameters)
# ----------------------------------------------------------------------------
def kaiming_uniform(key, shape):
    fan_in = shape[1]
    bound = jnp.sqrt(2.0) * jnp.sqrt(3.0 / fan_in)
    return jax.random.uniform(key, shape, jnp.float32, -bound, bound)


def init_gcn_params(key, in_feats, hid_feats, out_feats, n_layers):
    params = []
    for i in range(n_layers):
        fi = in_feats if i == 0 else hid_feats
        fo = hid_feats if i < n_layers - 1 else out_feats
        key, ku, kv = jax.random.split(key, 3)
        params.append(dict(
            w_u=kaiming_uniform(ku, (fi, fo)),
            w_v=kaiming_uniform(kv, (fi, fo)),
            bias=jnp.zeros((fo,), jnp.float32),
        ))
    return params


# ----------------------------------------------------------------------------
# Demo
# ----------------------------------------------------------------------------
if __name__ == "__main__":
    key = jax.random.PRNGKey(0)
    k_graph, k_feat, k_param = jax.random.split(key, 3)

    N = 16          # nodes
    IN_FEATS = 8
    HID_FEATS = 32
    OUT_FEATS = 16
    N_LAYERS = 2
    DROPOUT = 0.1   # unused at inference (identity)

    # Deterministic random directed graph as dense aggregation matrix.
    adj = jax.random.bernoulli(k_graph, 0.3, (N, N)).astype(jnp.float32)
    adj = adj * (1.0 - jnp.eye(N, dtype=jnp.float32))   # drop self loops

    feat = jax.random.normal(k_feat, (N, IN_FEATS), jnp.float32)
    params = init_gcn_params(k_param, IN_FEATS, HID_FEATS, OUT_FEATS, N_LAYERS)

    out = gcn_forward(adj, feat, params)
    jax.block_until_ready(out)

    assert out.shape == (N, OUT_FEATS), out.shape
    assert bool(jnp.all(jnp.isfinite(out)))

    ref = gcn_reference(adj, feat, params)
    # bf16 activations / weights / aggregation -> loose tolerance.
    assert bool(jnp.allclose(out, ref, atol=1e-1, rtol=1e-1)), (
        float(jnp.max(jnp.abs(out - ref))))

    print("KERNEL_OK")
</pallas_src>

<mosaic_0001>
module attributes {stable_mosaic.version = 11 : i64} {
  func.func @gcn_stack_kernel(%arg0: i32, %arg1: i32, %arg2: memref<128x128xi8, #tpu.memory_space<vmem>>, %arg3: memref<128x128xbf16, #tpu.memory_space<any>>, %arg4: memref<128x1xf32, #tpu.memory_space<vmem>>, %arg5: memref<1x128x128xbf16, #tpu.memory_space<vmem>>, %arg6: memref<1x128x128xbf16, #tpu.memory_space<vmem>>, %arg7: memref<1x1x128xf32, #tpu.memory_space<vmem>>, %arg8: memref<128x128xf32, #tpu.memory_space<vmem>>, %arg9: memref<2x128x128xbf16, #tpu.memory_space<vmem>>, %arg10: memref<!tpu.dma_semaphore, #tpu.memory_space<semaphore_mem>>) attributes {dimension_semantics = [#tpu.dimension_semantics<arbitrary>, #tpu.dimension_semantics<arbitrary>], iteration_bounds = array<i64: 2, 1>, scalar_prefetch = 0 : i64, scratch_operands = 2 : i64, tpu.core_type = #tpu.core_type<tc>, window_params = [{transform_indices = @transform_0, window_bounds = array<i64: 128, 128>}, {}, {transform_indices = @transform_2, window_bounds = array<i64: 128, 1>}, {transform_indices = @transform_3, window_bounds = array<i64: 1, 128, 128>}, {transform_indices = @transform_4, window_bounds = array<i64: 1, 128, 128>}, {transform_indices = @transform_5, window_bounds = array<i64: 1, 1, 128>}, {pipeline_mode = #tpu.pipeline_mode<synchronous>, transform_indices = @transform_6, window_bounds = array<i64: 128, 128>}]} {
    %c128_i32 = arith.constant 128 : i32
    %0 = arith.muli %arg1, %c128_i32 : i32
    %1 = tpu.assume_multiple %0, 128 : i32
    %c0_i32 = arith.constant 0 : i32
    %2 = arith.cmpi eq, %arg0, %c0_i32 : i32
    %c0_i32_0 = arith.constant 0 : i32
    %3 = arith.cmpi eq, %arg1, %c0_i32_0 : i32
    %4 = arith.andi %2, %3 : i1
    %5 = arith.extui %4 : i1 to i32
    %c0_i32_1 = arith.constant 0 : i32
    %6 = arith.cmpi ne, %5, %c0_i32_1 : i32
    scf.if %6 {
      %c0_i32_34 = arith.constant 0 : i32
      %c0_i32_35 = arith.constant 0 : i32
      %c0_i32_36 = arith.constant 0 : i32
      %64 = tpu.memref_slice %arg9[%c0_i32_34, %c0_i32_35, %c0_i32_36] : memref<2x128x128xbf16, #tpu.memory_space<vmem>> -> memref<1x128x128xbf16, #tpu.memory_space<vmem>>
      %65 = tpu.memref_squeeze %64 : memref<1x128x128xbf16, #tpu.memory_space<vmem>> -> memref<128x128xbf16, #tpu.memory_space<vmem>>
      tpu.enqueue_dma source(%arg3 : memref<128x128xbf16, #tpu.memory_space<any>>) target(%65 : memref<128x128xbf16, #tpu.memory_space<vmem>>) target_semaphore(%arg10 : memref<!tpu.dma_semaphore, #tpu.memory_space<semaphore_mem>>)
      %c0_i32_37 = arith.constant 0 : i32
      %c0_i32_38 = arith.constant 0 : i32
      %c0_i32_39 = arith.constant 0 : i32
      %66 = tpu.memref_slice %arg9[%c0_i32_37, %c0_i32_38, %c0_i32_39] : memref<2x128x128xbf16, #tpu.memory_space<vmem>> -> memref<1x128x128xbf16, #tpu.memory_space<vmem>>
      %67 = tpu.memref_squeeze %66 : memref<1x128x128xbf16, #tpu.memory_space<vmem>> -> memref<128x128xbf16, #tpu.memory_space<vmem>>
      tpu.wait_dma2 semaphore(%arg10 : memref<!tpu.dma_semaphore, #tpu.memory_space<semaphore_mem>>) src(%arg3 : memref<128x128xbf16, #tpu.memory_space<any>>) dst(%67 : memref<128x128xbf16, #tpu.memory_space<vmem>>)
    } else {
    }
    %c2_i32 = arith.constant 2 : i32
    %c0_i32_2 = arith.constant 0 : i32
    %7 = arith.cmpi eq, %c2_i32, %c0_i32_2 : i32
    %c1_i32 = arith.constant 1 : i32
    %8 = arith.select %7, %c1_i32, %c2_i32 : i32
    %9 = arith.remsi %arg0, %8 : i32
    %c0_i32_3 = arith.constant 0 : i32
    %10 = arith.cmpi ne, %9, %c0_i32_3 : i32
    %c0_i32_4 = arith.constant 0 : i32
    %11 = arith.cmpi slt, %9, %c0_i32_4 : i32
    %c0_i32_5 = arith.constant 0 : i32
    %12 = arith.cmpi slt, %8, %c0_i32_5 : i32
    %13 = arith.xori %11, %12 : i1
    %14 = arith.andi %13, %10 : i1
    %15 = arith.addi %9, %8 : i32
    %16 = arith.select %14, %15, %9 : i32
    %c1_i32_6 = arith.constant 1 : i32
    %17 = arith.addi %arg0, %c1_i32_6 : i32
    %c2_i32_7 = arith.constant 2 : i32
    %c0_i32_8 = arith.constant 0 : i32
    %18 = arith.cmpi eq, %c2_i32_7, %c0_i32_8 : i32
    %c1_i32_9 = arith.constant 1 : i32
    %19 = arith.select %18, %c1_i32_9, %c2_i32_7 : i32
    %20 = arith.remsi %17, %19 : i32
    %c0_i32_10 = arith.constant 0 : i32
    %21 = arith.cmpi ne, %20, %c0_i32_10 : i32
    %c0_i32_11 = arith.constant 0 : i32
    %22 = arith.cmpi slt, %20, %c0_i32_11 : i32
    %c0_i32_12 = arith.constant 0 : i32
    %23 = arith.cmpi slt, %19, %c0_i32_12 : i32
    %24 = arith.xori %22, %23 : i1
    %25 = arith.andi %24, %21 : i1
    %26 = arith.addi %20, %19 : i32
    %27 = arith.select %25, %26, %20 : i32
    %28 = arith.index_cast %16 : i32 to index
    %c0 = arith.constant 0 : index
    %c0_13 = arith.constant 0 : index
    %29 = vector.load %arg9[%28, %c0, %c0_13] : memref<2x128x128xbf16, #tpu.memory_space<vmem>>, vector<1x128x128xbf16>
    %30 = vector.shape_cast %29 : vector<1x128x128xbf16> to vector<128x128xbf16>
    %31 = arith.index_cast %16 : i32 to index
    %32 = arith.index_cast %1 : i32 to index
    %c0_14 = arith.constant 0 : index
    %33 = vector.load %arg9[%31, %32, %c0_14] : memref<2x128x128xbf16, #tpu.memory_space<vmem>>, vector<1x128x128xbf16>
    %34 = vector.shape_cast %33 : vector<1x128x128xbf16> to vector<128x128xbf16>
    %c0_15 = arith.constant 0 : index
    %c0_16 = arith.constant 0 : index
    %c0_17 = arith.constant 0 : index
    %35 = vector.load %arg5[%c0_15, %c0_16, %c0_17] : memref<1x128x128xbf16, #tpu.memory_space<vmem>>, vector<1x128x128xbf16>
    %36 = vector.shape_cast %35 : vector<1x128x128xbf16> to vector<128x128xbf16>
    %c0_18 = arith.constant 0 : index
    %c0_19 = arith.constant 0 : index
    %c0_20 = arith.constant 0 : index
    %37 = vector.load %arg6[%c0_18, %c0_19, %c0_20] : memref<1x128x128xbf16, #tpu.memory_space<vmem>>, vector<1x128x128xbf16>
    %38 = vector.shape_cast %37 : vector<1x128x128xbf16> to vector<128x128xbf16>
    %c0_21 = arith.constant 0 : index
    %c0_22 = arith.constant 0 : index
    %c0_23 = arith.constant 0 : index
    %39 = vector.load %arg7[%c0_21, %c0_22, %c0_23] : memref<1x1x128xf32, #tpu.memory_space<vmem>>, vector<1x1x128xf32>
    %40 = vector.shape_cast %39 : vector<1x1x128xf32> to vector<1x128xf32>
    %cst = arith.constant dense<0.000000e+00> : vector<128x128xf32>
    %41 = tpu.matmul %34, %38, %cst {dimension_numbers = #tpu.dot_dimension_numbers<[1], [0], [0], [1], [0, 0, 1, 1], [], []>} : vector<128x128xbf16>, vector<128x128xbf16>, vector<128x128xf32> -> vector<128x128xf32>
    %c0_24 = arith.constant 0 : index
    %c0_25 = arith.constant 0 : index
    %42 = vector.load %arg2[%c0_24, %c0_25] : memref<128x128xi8, #tpu.memory_space<vmem>>, vector<128x128xi8>
    %43 = arith.sitofp %42 : vector<128x128xi8> to vector<128x128xbf16>
    %cst_26 = arith.constant dense<0.000000e+00> : vector<128x128xf32>
    %44 = tpu.matmul %43, %30, %cst_26 {dimension_numbers = #tpu.dot_dimension_numbers<[1], [0], [0], [1], [0, 0, 1, 1], [], []>} : vector<128x128xbf16>, vector<128x128xbf16>, vector<128x128xf32> -> vector<128x128xf32>
    %45 = arith.truncf %44 : vector<128x128xf32> to vector<128x128xbf16>
    %cst_27 = arith.constant dense<0.000000e+00> : vector<128x128xf32>
    %46 = tpu.matmul %45, %36, %cst_27 {dimension_numbers = #tpu.dot_dimension_numbers<[1], [0], [0], [1], [0, 0, 1, 1], [], []>} : vector<128x128xbf16>, vector<128x128xbf16>, vector<128x128xf32> -> vector<128x128xf32>
    %c0_28 = arith.constant 0 : index
    %c0_29 = arith.constant 0 : index
    %47 = vector.load %arg4[%c0_28, %c0_29] : memref<128x1xf32, #tpu.memory_space<vmem>>, vector<128x1xf32>
    %48 = vector.broadcast %47 : vector<128x1xf32> to vector<128x128xf32>
    %49 = arith.mulf %48, %46 : vector<128x128xf32>
    %50 = arith.addf %41, %49 : vector<128x128xf32>
    %51 = vector.broadcast %40 : vector<1x128xf32> to vector<128x128xf32>
    %52 = arith.addf %50, %51 : vector<128x128xf32>
    %cst_30 = arith.constant 0.000000e+00 : f32
    %53 = vector.broadcast %cst_30 : f32 to vector<128x128xf32>
    %54 = arith.maximumf %52, %53 : vector<128x128xf32>
    %55 = arith.truncf %54 : vector<128x128xf32> to vector<128x128xbf16>
    %56 = arith.index_cast %27 : i32 to index
    %57 = arith.index_cast %1 : i32 to index
    %c0_31 = arith.constant 0 : index
    %58 = vector.load %arg9[%56, %57, %c0_31] : memref<2x128x128xbf16, #tpu.memory_space<vmem>>, vector<1x128x128xbf16>
    %59 = vector.shape_cast %58 : vector<1x128x128xbf16> to vector<128x128xbf16>
    %60 = vector.shape_cast %55 : vector<128x128xbf16> to vector<1x128x128xbf16>
    tpu.vector_store %arg9[%56, %57, %c0_31], %60 {strides = array<i32>} : memref<2x128x128xbf16, #tpu.memory_space<vmem>>, vector<1x128x128xbf16>,
    %c1_i32_32 = arith.constant 1 : i32
    %61 = arith.cmpi eq, %arg0, %c1_i32_32 : i32
    %62 = arith.extui %61 : i1 to i32
    %c0_i32_33 = arith.constant 0 : i32
    %63 = arith.cmpi ne, %62, %c0_i32_33 : i32
    scf.if %63 {
      %64 = arith.index_cast %1 : i32 to index
      %c0_34 = arith.constant 0 : index
      %65 = vector.load %arg8[%64, %c0_34] : memref<128x128xf32, #tpu.memory_space<vmem>>, vector<128x128xf32>
      tpu.vector_store %arg8[%64, %c0_34], %54 {strides = array<i32>} : memref<128x128xf32, #tpu.memory_space<vmem>>, vector<128x128xf32>,
    } else {
    }
    return
  }
  func.func @transform_0(%arg0: i32, %arg1: i32) -> (i32, i32) {
    %c0_i32 = arith.constant 0 : i32
    %c0_i32_0 = arith.constant 0 : i32
    return %arg1, %c0_i32 : i32, i32
  }
  func.func @transform_2(%arg0: i32, %arg1: i32) -> (i32, i32) {
    %c0_i32 = arith.constant 0 : i32
    %c0_i32_0 = arith.constant 0 : i32
    return %arg1, %c0_i32 : i32, i32
  }
  func.func @transform_3(%arg0: i32, %arg1: i32) -> (i32, i32, i32) {
    %c0_i32 = arith.constant 0 : i32
    %c0_i32_0 = arith.constant 0 : i32
    %c0_i32_1 = arith.constant 0 : i32
    return %arg0, %c0_i32, %c0_i32_0 : i32, i32, i32
  }
  func.func @transform_4(%arg0: i32, %arg1: i32) -> (i32, i32, i32) {
    %c0_i32 = arith.constant 0 : i32
    %c0_i32_0 = arith.constant 0 : i32
    %c0_i32_1 = arith.constant 0 : i32
    return %arg0, %c0_i32, %c0_i32_0 : i32, i32, i32
  }
  func.func @transform_5(%arg0: i32, %arg1: i32) -> (i32, i32, i32) {
    %c0_i32 = arith.constant 0 : i32
    %c0_i32_0 = arith.constant 0 : i32
    %c0_i32_1 = arith.constant 0 : i32
    return %arg0, %c0_i32, %c0_i32_0 : i32, i32, i32
  }
  func.func @transform_6(%arg0: i32, %arg1: i32) -> (i32, i32) {
    %c0_i32 = arith.constant 0 : i32
    %c0_i32_0 = arith.constant 0 : i32
    %c0_i32_1 = arith.constant 0 : i32
    return %c0_i32, %c0_i32_0 : i32, i32
  }
}

</mosaic_0001>

<llo_original>
// kernel: gcn_forward.1
$region0: #{gcn_forward.1}
  #allocation0 [shape = 'u32[]', space=smem, size = 0x4, offset = 0x4, fixed_abs, tag = 'smem constant byte address 0x4 - core index']
  #allocation1 [shape = 'u32[144,128]{1,0:T(1,128)}', space=vmem, size = 0x12000, scoped, tag = 'internal scratch']
  #allocation2 [shape = 'bf16[2,128,128]{2,1,0:T(16,128)(2,1)}', space=vmem, size = 0x10000, scoped, tag = 'scratch operand']
  #allocation3 [shape = 's32[1]{0}', space=sflag, size = 0x4, scoped, tag = 'scratch operand']
  #allocation4 [shape = 's32[]', space=sflag, size = 0x4, offset = 0, fixed_abs, tag = 'sflag constant byte address 0x0 - dummy sync flag']
  %s0 = inlined_call_operand.vmem [shape: s8[128,128], index: 0, kind: input, shape index: {}]
  %s1 = inlined_call_operand.vmem [shape: bf16[128,128], index: 1, kind: input, shape index: {}]
  %s2 = inlined_call_operand.vmem [shape: f32[128,1], index: 2, kind: input, shape index: {}]
  %s3 = inlined_call_operand.vmem [shape: bf16[2,128,128], index: 3, kind: input, shape index: {}]
  %s4 = inlined_call_operand.vmem [shape: bf16[2,128,128], index: 4, kind: input, shape index: {}]
  %s5 = inlined_call_operand.vmem [shape: f32[2,1,128], index: 5, kind: input, shape index: {}]
  %s6 = inlined_call_operand.vmem [shape: f32[128,128], index: 6, kind: output, shape index: {}]
  %s7 = sld [smem:[#allocation0]]
  $region95: #{gcn_forward.1} parent=0
    _
  %s9 = ssub.s32 1, %s7
  %s10 = scalar_select 0, %s9, %s7
  loop: start=0, step=1, limit=4
  $region2: #{gcn_forward.1} parent=0 // loop_pre_header
    _
  $region3: #{gcn_forward.1} parent=0 // loop_header
    %s12 = sphi 0, %s16
    %p13 = scmp.ge.s32.totalorder %s12, 4
    %s19 = sphi 0, %s31
    %s20 = sphi 0, %s27
    %s21 = sphi 0, %s19
    %s22 = sphi 0, %s20
    %s23 = sphi 0, %s21
    %s24 = sphi 0, %s22
    %s34 = sphi 0, %s36
    %s37 = sphi 0, %s34
    %s38 = sphi 0, %s37
    %s54 = sphi 0, %s38
    %s60 = sphi 0, %s62
    %s63 = sphi 0, %s60
    %s64 = sphi 0, %s63
    %s80 = sphi 0, %s64
    %s86 = sphi 0, %s88
    %s89 = sphi 0, %s86
    %s90 = sphi 0, %s89
    %s106 = sphi 0, %s90
    %s112 = sphi 0, %s114
    %s115 = sphi 0, %s112
    %s116 = sphi 0, %s115
    %s132 = sphi 0, %s116
    %s138 = sphi 0, %s140
    %s141 = sphi 0, %s138
    %s142 = sphi 0, %s141
    %s158 = sphi 0, %s142
    %s162 = sphi 0, %s162
    %s164 = sphi 0, %s162
    %s165 = sphi 0, %s164
    %s179 = sphi 0, %s165
  $region4: #{gcn_forward.1} parent=0 // loop_header_branch
    %15 = sbr.rel (%p13) target = $region8
  $region5: #{gcn_forward.1} parent=0 // loop_body
    %s17 = ssub.s32 %s12, 1
    %s18 = ssub.s32 %s12, 2
    %s25 = sadd.s32 1, %s20
    %p26 = scmp.ge.s32.totalorder %s25, 1
    %s27 = scalar_select %p26, 0, %s25
    %s28 = sadd.s32 1, %s19
    %s29 = scalar_select %p26, %s28, %s19
    %p30 = scmp.ge.s32.totalorder %s29, 2
    %s31 = scalar_select %p30, 0, %s29
    %s32 = ssub.s32 %s20, %s27
    %p33 = scmp.eq.s32.totalorder %s32, 0
    %s35 = sadd.s32 %s34, 1
    %s36 = scalar_select %p33, %s34, %s35
    %p39 = pneg %p33
    %p40 = scmp.eq.s32.totalorder %s12, 1
    %p41 = por %p39, %p40
    %p42 = scmp.ne.s32.totalorder %s34, %s37
    %p43 = scmp.eq.s32.totalorder %s12, 0
    %p44 = por %p42, %p43
    %p45 = scmp.ne.s32.totalorder %s34, %s37
    %p46 = scmp.eq.s32.totalorder %s17, 1
    %p47 = por %p45, %p46
    %p48 = scmp.ne.s32.totalorder %s37, %s38
    %p49 = scmp.eq.s32.totalorder %s17, 0
    %p50 = por %p48, %p49
    %p51 = scmp.ne.s32.totalorder %s37, %s38
    %p52 = scmp.eq.s32.totalorder %s18, 1
    %p53 = por %p51, %p52
    %p55 = scmp.ne.s32.totalorder %s38, %s54
    %p56 = scmp.eq.s32.totalorder %s18, 0
    %p57 = por %p55, %p56
    %s58 = ssub.s32 %s20, %s27
    %p59 = scmp.eq.s32.totalorder %s58, 0
    %s61 = sadd.s32 %s60, 1
    %s62 = scalar_select %p59, %s60, %s61
    %p65 = pneg %p59
    %p66 = scmp.eq.s32.totalorder %s12, 1
    %p67 = por %p65, %p66
    %p68 = scmp.ne.s32.totalorder %s60, %s63
    %p69 = scmp.eq.s32.totalorder %s12, 0
    %p70 = por %p68, %p69
    %p71 = scmp.ne.s32.totalorder %s60, %s63
    %p72 = scmp.eq.s32.totalorder %s17, 1
    %p73 = por %p71, %p72
    %p74 = scmp.ne.s32.totalorder %s63, %s64
    %p75 = scmp.eq.s32.totalorder %s17, 0
    %p76 = por %p74, %p75
    %p77 = scmp.ne.s32.totalorder %s63, %s64
    %p78 = scmp.eq.s32.totalorder %s18, 1
    %p79 = por %p77, %p78
    %p81 = scmp.ne.s32.totalorder %s64, %s80
    %p82 = scmp.eq.s32.totalorder %s18, 0
    %p83 = por %p81, %p82
    %s84 = ssub.s32 %s19, %s31
    %p85 = scmp.eq.s32.totalorder %s84, 0
    %s87 = sadd.s32 %s86, 1
    %s88 = scalar_select %p85, %s86, %s87
    %p91 = pneg %p85
    %p92 = scmp.eq.s32.totalorder %s12, 1
    %p93 = por %p91, %p92
    %p94 = scmp.ne.s32.totalorder %s86, %s89
    %p95 = scmp.eq.s32.totalorder %s12, 0
    %p96 = por %p94, %p95
    %p97 = scmp.ne.s32.totalorder %s86, %s89
    %p98 = scmp.eq.s32.totalorder %s17, 1
    %p99 = por %p97, %p98
    %p100 = scmp.ne.s32.totalorder %s89, %s90
    %p101 = scmp.eq.s32.totalorder %s17, 0
    %p102 = por %p100, %p101
    %p103 = scmp.ne.s32.totalorder %s89, %s90
    %p104 = scmp.eq.s32.totalorder %s18, 1
    %p105 = por %p103, %p104
    %p107 = scmp.ne.s32.totalorder %s90, %s106
    %p108 = scmp.eq.s32.totalorder %s18, 0
    %p109 = por %p107, %p108
    %s110 = ssub.s32 %s19, %s31
    %p111 = scmp.eq.s32.totalorder %s110, 0
    %s113 = sadd.s32 %s112, 1
    %s114 = scalar_select %p111, %s112, %s113
    %p117 = pneg %p111
    %p118 = scmp.eq.s32.totalorder %s12, 1
    %p119 = por %p117, %p118
    %p120 = scmp.ne.s32.totalorder %s112, %s115
    %p121 = scmp.eq.s32.totalorder %s12, 0
    %p122 = por %p120, %p121
    %p123 = scmp.ne.s32.totalorder %s112, %s115
    %p124 = scmp.eq.s32.totalorder %s17, 1
    %p125 = por %p123, %p124
    %p126 = scmp.ne.s32.totalorder %s115, %s116
    %p127 = scmp.eq.s32.totalorder %s17, 0
    %p128 = por %p126, %p127
    %p129 = scmp.ne.s32.totalorder %s115, %s116
    %p130 = scmp.eq.s32.totalorder %s18, 1
    %p131 = por %p129, %p130
    %p133 = scmp.ne.s32.totalorder %s116, %s132
    %p134 = scmp.eq.s32.totalorder %s18, 0
    %p135 = por %p133, %p134
    %s136 = ssub.s32 %s19, %s31
    %p137 = scmp.eq.s32.totalorder %s136, 0
    %s139 = sadd.s32 %s138, 1
    %s140 = scalar_select %p137, %s138, %s139
    %p143 = pneg %p137
    %p144 = scmp.eq.s32.totalorder %s12, 1
    %p145 = por %p143, %p144
    %p146 = scmp.ne.s32.totalorder %s138, %s141
    %p147 = scmp.eq.s32.totalorder %s12, 0
    %p148 = por %p146, %p147
    %p149 = scmp.ne.s32.totalorder %s138, %s141
    %p150 = scmp.eq.s32.totalorder %s17, 1
    %p151 = por %p149, %p150
    %p152 = scmp.ne.s32.totalorder %s141, %s142
    %p153 = scmp.eq.s32.totalorder %s17, 0
    %p154 = por %p152, %p153
    %p155 = scmp.ne.s32.totalorder %s141, %s142
    %p156 = scmp.eq.s32.totalorder %s18, 1
    %p157 = por %p155, %p156
    %p159 = scmp.ne.s32.totalorder %s142, %s158
    %p160 = scmp.eq.s32.totalorder %s18, 0
    %p161 = por %p159, %p160
    %s163 = sadd.s32 %s162, 1
    %p166 = scmp.eq.s32.totalorder %s12, 1
    %p167 = scmp.ne.s32.totalorder %s162, %s164
    %p168 = scmp.eq.s32.totalorder %s12, 0
    %p169 = por %p167, %p168
    %p170 = scmp.ne.s32.totalorder %s162, %s164
    %p171 = scmp.eq.s32.totalorder %s17, 1
    %p172 = por %p170, %p171
    %p173 = scmp.ne.s32.totalorder %s164, %s165
    %p174 = scmp.eq.s32.totalorder %s17, 0
    %p175 = por %p173, %p174
    %p176 = scmp.ne.s32.totalorder %s164, %s165
    %p177 = scmp.eq.s32.totalorder %s18, 1
    %p178 = por %p176, %p177
    %p180 = scmp.ne.s32.totalorder %s165, %s179
    %p181 = scmp.eq.s32.totalorder %s18, 0
    %p182 = por %p180, %p181
    %p183 = scmp.le.s32.totalorder 1, %s12
    %p184 = scmp.lt.s32.totalorder %s12, 3
    %p185 = pnand %p183, %p184
    %p186 = pneg %p185
    // Predicated region
    $region9: #{gcn_forward.1} parent=5 // pred_check
      _
    $region10: #{gcn_forward.1} parent=5 // pred_check_branch
      %188 = sbr.rel (%p185) target = $region12
    $region11: #{gcn_forward.1} parent=5 // pred_region
      %s189 = ssub.s32 %s12, 1
      // Predicated region
      $region13: #{gcn_forward.1} parent=11 // pred_check
        %p190 = pneg %p50
      $region14: #{gcn_forward.1} parent=11 // pred_check_branch
        %192 = sbr.rel (%p190) target = $region16
      $region15: #{gcn_forward.1} parent=11 // pred_region
        %s193 = smul.u32 4, %s22
        %p194 = scmp.lt.s32.totalorder %s193, 3
        %s195 = scalar_select %p194, %s193, 3
        %s196 = smul.addr %s195, 8
        %s197 = scalar_lea.vmem %s0, %s196
        %s198 = smul.u32 4, %s22
      $region16: #{gcn_forward.1} parent=11 // pred_fallthru
        _
      // Predicated region
      $region17: #{gcn_forward.1} parent=11 // pred_check
        %p199 = pneg %p76
      $region18: #{gcn_forward.1} parent=11 // pred_check_branch
        %201 = sbr.rel (%p199) target = $region20
      $region19: #{gcn_forward.1} parent=11 // pred_region
        %s202 = smul.u32 16, %s22
        %p203 = scmp.lt.s32.totalorder %s202, 15
        %s204 = scalar_select %p203, %s202, 15
        %s205 = smul.addr %s204, 8
        %s206 = scalar_lea.vmem %s2, %s205
        %s207 = smul.u32 16, %s22
      $region20: #{gcn_forward.1} parent=11 // pred_fallthru
        _
    $region12: #{gcn_forward.1} parent=5 // pred_fallthru
      _
    %p208 = scmp.lt.s32.totalorder %s12, 2
    // Predicated region
    $region21: #{gcn_forward.1} parent=5 // pred_check
      %p209 = pneg %p208
    $region22: #{gcn_forward.1} parent=5 // pred_check_branch
      %211 = sbr.rel (%p209) target = $region24
    $region23: #{gcn_forward.1} parent=5 // pred_region
      // Predicated region
      $region25: #{gcn_forward.1} parent=23 // pred_check
        %p212 = pneg %p96
      $region26: #{gcn_forward.1} parent=23 // pred_check_branch
        %214 = sbr.rel (%p212) target = $region28
      $region27: #{gcn_forward.1} parent=23 // pred_region
        %p215 = scmp.lt.s32.totalorder %s19, 1
        %s216 = scalar_select %p215, %s19, 1
        %s217 = smul.addr %s216, 16
        %s218 = smul.addr %s217, 4
        %s219 = scalar_lea.vmem %s3, %s218
      $region28: #{gcn_forward.1} parent=23 // pred_fallthru
        _
      // Predicated region
      $region29: #{gcn_forward.1} parent=23 // pred_check
        %p220 = pneg %p122
      $region30: #{gcn_forward.1} parent=23 // pred_check_branch
        %222 = sbr.rel (%p220) target = $region32
      $region31: #{gcn_forward.1} parent=23 // pred_region
        %p223 = scmp.lt.s32.totalorder %s19, 1
        %s224 = scalar_select %p223, %s19, 1
        %s225 = smul.addr %s224, 16
        %s226 = smul.addr %s225, 4
        %s227 = scalar_lea.vmem %s4, %s226
      $region32: #{gcn_forward.1} parent=23 // pred_fallthru
        _
      // Predicated region
      $region33: #{gcn_forward.1} parent=23 // pred_check
        %p228 = pneg %p148
      $region34: #{gcn_forward.1} parent=23 // pred_check_branch
        %230 = sbr.rel (%p228) target = $region36
      $region35: #{gcn_forward.1} parent=23 // pred_region
        %p231 = scmp.lt.s32.totalorder %s19, 1
        %s232 = scalar_select %p231, %s19, 1
        %s233 = scalar_lea.vmem %s5, %s232
      $region36: #{gcn_forward.1} parent=23 // pred_fallthru
        _
    $region24: #{gcn_forward.1} parent=5 // pred_fallthru
      _
    %p234 = scmp.le.s32.totalorder 1, %s12
    %p235 = scmp.lt.s32.totalorder %s12, 3
    %p236 = pnand %p234, %p235
    %p237 = pneg %p236
    // Predicated region
    $region37: #{gcn_forward.1} parent=5 // pred_check
      _
    $region38: #{gcn_forward.1} parent=5 // pred_check_branch
      %239 = sbr.rel (%p236) target = $region40
    $region39: #{gcn_forward.1} parent=5 // pred_region
      %s240 = ssub.s32 %s12, 1
      %s241 = smul.u32 4, %s22
      %p242 = scmp.lt.s32.totalorder %s241, 3
      %s243 = scalar_select %p242, %s241, 3
      %s244 = smul.addr %s243, 8
      %s245 = scalar_lea.vmem %s0, %s244
      %p246 = pneg %p50
      %p247 = pneg %p47
      %s248 = smul.u32 16, %s22
      %p249 = scmp.lt.s32.totalorder %s248, 15
      %s250 = scalar_select %p249, %s248, 15
      %s251 = smul.addr %s250, 8
      %s252 = scalar_lea.vmem %s2, %s251
      %p253 = pneg %p76
      %p254 = pneg %p73
      %p255 = scmp.lt.s32.totalorder %s21, 1
      %s256 = scalar_select %p255, %s21, 1
      %s257 = smul.addr %s256, 16
      %s258 = smul.addr %s257, 4
      %s259 = scalar_lea.vmem %s3, %s258
      %p260 = pneg %p102
      %p261 = pneg %p99
      %p262 = scmp.lt.s32.totalorder %s21, 1
      %s263 = scalar_select %p262, %s21, 1
      %s264 = smul.addr %s263, 16
      %s265 = smul.addr %s264, 4
      %s266 = scalar_lea.vmem %s4, %s265
      %p267 = pneg %p128
      %p268 = pneg %p125
      %p269 = scmp.lt.s32.totalorder %s21, 1
      %s270 = scalar_select %p269, %s21, 1
      %s271 = scalar_lea.vmem %s5, %s270
      %p272 = pneg %p154
      %p273 = pneg %p151
      %p274 = pneg %p175
      %p275 = pneg %p172
      %s276 = smul.u32 4, %s22
      %p277 = scmp.lt.s32.totalorder %s276, 3
      %s278 = scalar_select %p277, %s276, 3
      %s279 = smul.addr %s278, 8
      %s280 = scalar_lea.vmem %s0, %s279
      %s281 = smul.u32 4, %s22
      %s282 = smul.u32 16, %s22
      %p283 = scmp.lt.s32.totalorder %s282, 15
      %s284 = scalar_select %p283, %s282, 15
      %s285 = smul.addr %s284, 8
      %s286 = scalar_lea.vmem %s2, %s285
      %s287 = smul.u32 16, %s22
      %p288 = scmp.lt.s32.totalorder %s21, 1
      %s289 = scalar_select %p288, %s21, 1
      %s290 = smul.addr %s289, 16
      %s291 = smul.addr %s290, 4
      %s292 = scalar_lea.vmem %s3, %s291
      %p293 = scmp.lt.s32.totalorder %s21, 1
      %s294 = scalar_select %p293, %s21, 1
      %s295 = smul.addr %s294, 16
      %s296 = smul.addr %s295, 4
      %s297 = scalar_lea.vmem %s4, %s296
      %p298 = scmp.lt.s32.totalorder %s21, 1
      %s299 = scalar_select %p298, %s21, 1
      %s300 = scalar_lea.vmem %s5, %s299
      %s302 = smul.u32 %s22, 128
      %p303 = scmp.eq.s32.totalorder %s21, 0
      %p304 = scmp.eq.s32.totalorder %s22, 0
      %p305 = pnand %p303, %p304
      %p306 = pneg %p305
      // Predicated region
      $region41: #{gcn_forward.1} parent=39 // pred_check
        _
      $region42: #{gcn_forward.1} parent=39 // pred_check_branch
        %308 = sbr.rel (%p305) target = $region44
      $region43: #{gcn_forward.1} parent=39 // pred_region
        %p310 = scmp.lt.u32.totalorder 64, 8
        %p311 = pneg %p310
        // Predicated region
        $region45: #{gcn_forward.1} parent=43 // pred_check
          _
        $region46: #{gcn_forward.1} parent=43 // pred_check_branch
          %313 = sbr.rel (%p310) target = $region48
        $region47: #{gcn_forward.1} parent=43 // pred_region
          %s328 = sand.u32 64, 7
          %p329 = scmp.eq.s32.totalorder %s328, 0
          // Predicated region
          $region60: #{gcn_forward.1} parent=47 // pred_check
            %p330 = pneg %p329
          $region61: #{gcn_forward.1} parent=47 // pred_check_branch
            %332 = sbr.rel (%p330) target = $region63
          $region62: #{gcn_forward.1} parent=47 // pred_region
            loop: start=0, step=1, limit=1
            $region64: #{gcn_forward.1} parent=62 // loop_pre_header
              _
            $region65: #{gcn_forward.1} parent=62 // loop_header
              %s334 = sphi 0, %s338
              %p335 = scmp.ge.s32.totalorder %s334, 1
              %s339 = sphi %s1, %s1
              %s340 = sphi [#allocation2], [#allocation2]
            $region66: #{gcn_forward.1} parent=62 // loop_header_branch
              %337 = sbr.rel (%p335) target = $region70
            $region67: #{gcn_forward.1} parent=62 // loop_body
              %v341 = vld [vmem:[%s339] sm:$0xff]
              %342 = vst [vmem:[%s340] sm:$0xff] %v341
              %v343 = vld [vmem:[%s339 + $0x8] sm:$0xff]
              %344 = vst [vmem:[%s340 + $0x8] sm:$0xff] %v343
              %v345 = vld [vmem:[%s339 + $0x10] sm:$0xff]
              %346 = vst [vmem:[%s340 + $0x10] sm:$0xff] %v345
              %v347 = vld [vmem:[%s339 + $0x18] sm:$0xff]
              %348 = vst [vmem:[%s340 + $0x18] sm:$0xff] %v347
              %v349 = vld [vmem:[%s339 + $0x20] sm:$0xff]
              %350 = vst [vmem:[%s340 + $0x20] sm:$0xff] %v349
              %v351 = vld [vmem:[%s339 + $0x28] sm:$0xff]
              %352 = vst [vmem:[%s340 + $0x28] sm:$0xff] %v351
              %v353 = vld [vmem:[%s339 + $0x30] sm:$0xff]
              %354 = vst [vmem:[%s340 + $0x30] sm:$0xff] %v353
              %v355 = vld [vmem:[%s339 + $0x38] sm:$0xff]
              %356 = vst [vmem:[%s340 + $0x38] sm:$0xff] %v355
            $region68: #{gcn_forward.1} parent=62 // loop_footer
              %s338 = sadd.s32 1, %s334
            $region69: #{gcn_forward.1} parent=62 // loop_footer_branch
              %333 = sbr.rel target = $region65
            $region70: #{gcn_forward.1} parent=62 // loop_exit
              _
          $region63: #{gcn_forward.1} parent=47 // pred_fallthru
            _
          %p357 = pneg %p329
          // Predicated region
          $region71: #{gcn_forward.1} parent=47 // pred_check
            _
          $region72: #{gcn_forward.1} parent=47 // pred_check_branch
            %359 = sbr.rel (%p329) target = $region74
          $region73: #{gcn_forward.1} parent=47 // pred_region
            %s360 = sand.u32 64, 7
          $region74: #{gcn_forward.1} parent=47 // pred_fallthru
            _
        $region48: #{gcn_forward.1} parent=43 // pred_fallthru
          _
        // Predicated region
        $region49: #{gcn_forward.1} parent=43 // pred_check
          %p314 = pneg %p310
        $region50: #{gcn_forward.1} parent=43 // pred_check_branch
          %316 = sbr.rel (%p314) target = $region52
        $region51: #{gcn_forward.1} parent=43 // pred_region
          %s317 = sshllo.u32 0, 64
          loop: start=0, step=1, limit=1
          $region53: #{gcn_forward.1} parent=51 // loop_pre_header
            _
          $region54: #{gcn_forward.1} parent=51 // loop_header
            %s319 = sphi 0, %s323
            %p320 = scmp.ge.s32.totalorder %s319, 1
            %s324 = sphi %s1, %s1
            %s325 = sphi [#allocation2], [#allocation2]
          $region55: #{gcn_forward.1} parent=51 // loop_header_branch
            %322 = sbr.rel (%p320) target = $region59
          $region56: #{gcn_forward.1} parent=51 // loop_body
            %v326 = vld [vmem:[%s324] sm:%s317]
            %327 = vst [vmem:[%s325] sm:%s317] %v326
          $region57: #{gcn_forward.1} parent=51 // loop_footer
            %s323 = sadd.s32 1, %s319
          $region58: #{gcn_forward.1} parent=51 // loop_footer_branch
            %318 = sbr.rel target = $region54
          $region59: #{gcn_forward.1} parent=51 // loop_exit
            _
        $region52: #{gcn_forward.1} parent=43 // pred_fallthru
          _
        // Predicated region
        $region75: #{gcn_forward.1} parent=43 // pred_check
          _
        $region76: #{gcn_forward.1} parent=43 // pred_check_branch
          %363 = sbr.rel (0) target = $region78
        $region77: #{gcn_forward.1} parent=43 // pred_region
          %364 = vsyncadd [#allocation3], 1024
        $region78: #{gcn_forward.1} parent=43 // pred_fallthru
          _
        %s365 = smul.u32 4, 16
        %s366 = smul.u32 %s365, 1
        %s367 = sshll.u32 %s366, 4
        %368 = dma.done [#allocation3], %s367
      $region44: #{gcn_forward.1} parent=39 // pred_fallthru
        _
      %p369 = scmp.lt.s32.totalorder %s21, 0
      %s370 = ssub.s32 0, %s21
      %s371 = scalar_select %p369, %s370, %s21
      %s372 = sand.u32 %s371, 1
      %s373 = ssub.s32 0, %s372
      %s374 = scalar_select %p369, %s373, %s372
      %p375 = scmp.ne.s32.totalorder %s374, 0
      %p376 = scmp.lt.s32.totalorder %s374, 0
      %p377 = pnand %p376, %p375
      %p378 = pneg %p377
      %s379 = sadd.s32 %s374, 2
      %s380 = scalar_select %p378, %s379, %s374
      %s381 = sadd.s32 %s21, 1
      %p382 = scmp.lt.s32.totalorder %s381, 0
      %s383 = ssub.s32 0, %s381
      %s384 = scalar_select %p382, %s383, %s381
      %s385 = sand.u32 %s384, 1
      %s386 = ssub.s32 0, %s385
      %s387 = scalar_select %p382, %s386, %s385
      %p388 = scmp.ne.s32.totalorder %s387, 0
      %p389 = scmp.lt.s32.totalorder %s387, 0
      %p390 = pnand %p389, %p388
      %p391 = pneg %p390
      %s392 = sadd.s32 %s387, 2
      %s393 = scalar_select %p391, %s392, %s387
      %s394 = smul.u32 %s380, 8
      %s395 = smul.addr %s394, 8
      %s396 = scalar_lea.vmem [#allocation2], %s395
      %v397 = vld [vmem:[%s396] sm:$0xff]
      %v398 = vld [vmem:[%s396 + $0x8] sm:$0xff]
      %v399 = vld [vmem:[%s396 + $0x10] sm:$0xff]
      %v400 = vld [vmem:[%s396 + $0x18] sm:$0xff]
      %v401 = vld [vmem:[%s396 + $0x20] sm:$0xff]
      %v402 = vld [vmem:[%s396 + $0x28] sm:$0xff]
      %v403 = vld [vmem:[%s396 + $0x30] sm:$0xff]
      %v404 = vld [vmem:[%s396 + $0x38] sm:$0xff]
      %s405 = sshra.s32 %s302, 4
      %s406 = sand.u32 %s302, 15
      %s407 = sadd.s32 %s405, %s394
      %s408 = smul.addr %s407, 8
      %s409 = scalar_lea.vmem [#allocation2], %s408
      %v410 = vld [vmem:[%s409] sm:$0xff]
      %v411 = vld [vmem:[%s409 + $0x8] sm:$0xff]
      %v412 = vld [vmem:[%s409 + $0x10] sm:$0xff]
      %v413 = vld [vmem:[%s409 + $0x18] sm:$0xff]
      %v414 = vld [vmem:[%s409 + $0x20] sm:$0xff]
      %v415 = vld [vmem:[%s409 + $0x28] sm:$0xff]
      %v416 = vld [vmem:[%s409 + $0x30] sm:$0xff]
      %v417 = vld [vmem:[%s409 + $0x38] sm:$0xff]
      %v418 = vld [vmem:[%s292] sm:$0xf]
      %v419 = vld [vmem:[%s292 + $0x4] sm:$0xf]
      %v420 = vld [vmem:[%s292 + $0x8] sm:$0xf]
      %v421 = vld [vmem:[%s292 + $0xc] sm:$0xf]
      %v422 = vld [vmem:[%s292 + $0x10] sm:$0xf]
      %v423 = vld [vmem:[%s292 + $0x14] sm:$0xf]
      %v424 = vld [vmem:[%s292 + $0x18] sm:$0xf]
      %v425 = vld [vmem:[%s292 + $0x1c] sm:$0xf]
      %v426 = vld [vmem:[%s292 + $0x20] sm:$0xf]
      %v427 = vld [vmem:[%s292 + $0x24] sm:$0xf]
      %v428 = vld [vmem:[%s292 + $0x28] sm:$0xf]
      %v429 = vld [vmem:[%s292 + $0x2c] sm:$0xf]
      %v430 = vld [vmem:[%s292 + $0x30] sm:$0xf]
      %v431 = vld [vmem:[%s292 + $0x34] sm:$0xf]
      %v432 = vld [vmem:[%s292 + $0x38] sm:$0xf]
      %v433 = vld [vmem:[%s292 + $0x3c] sm:$0xf]
      %v434 = vld [vmem:[%s297] sm:$0xf]
      %v435 = vld [vmem:[%s297 + $0x4] sm:$0xf]
      %v436 = vld [vmem:[%s297 + $0x8] sm:$0xf]
      %v437 = vld [vmem:[%s297 + $0xc] sm:$0xf]
      %v438 = vld [vmem:[%s297 + $0x10] sm:$0xf]
      %v439 = vld [vmem:[%s297 + $0x14] sm:$0xf]
      %v440 = vld [vmem:[%s297 + $0x18] sm:$0xf]
      %v441 = vld [vmem:[%s297 + $0x1c] sm:$0xf]
      %v442 = vld [vmem:[%s297 + $0x20] sm:$0xf]
      %v443 = vld [vmem:[%s297 + $0x24] sm:$0xf]
      %v444 = vld [vmem:[%s297 + $0x28] sm:$0xf]
      %v445 = vld [vmem:[%s297 + $0x2c] sm:$0xf]
      %v446 = vld [vmem:[%s297 + $0x30] sm:$0xf]
      %v447 = vld [vmem:[%s297 + $0x34] sm:$0xf]
      %v448 = vld [vmem:[%s297 + $0x38] sm:$0xf]
      %v449 = vld [vmem:[%s297 + $0x3c] sm:$0xf]
      %v450 = vld [vmem:[%s300] sm:$0x1]
      %v451 = vld [vmem:[%s280] sm:$0xff]
      %v452 = vld [vmem:[%s280 + $0x8] sm:$0xff]
      %v453 = vld [vmem:[%s280 + $0x10] sm:$0xff]
      %v454 = vld [vmem:[%s280 + $0x18] sm:$0xff]
      %v455 = vunpack.c.l.s8.bf16 %v451
      %v456 = vunpack.c.h.s8.bf16 %v451
      %v457 = vunpack.c.l.s8.bf16 %v452
      %v458 = vunpack.c.h.s8.bf16 %v452
      %v459 = vunpack.c.l.s8.bf16 %v453
      %v460 = vunpack.c.h.s8.bf16 %v453
      %v461 = vunpack.c.l.s8.bf16 %v454
      %v462 = vunpack.c.h.s8.bf16 %v454
      %463 = vmatprep.subr.bf16.mxu0 0
      %464 = vmatpush1.bf16.msra.mxu0 %v397
      %465 = vmatprep.subr.bf16.mxu0 0
      %466 = vmatpush1.bf16.msra.mxu0 %v398
      %467 = vmatprep.subr.bf16.mxu0 0
      %468 = vmatpush1.bf16.msra.mxu0 %v399
      %469 = vmatprep.subr.bf16.mxu0 0
      %470 = vmatpush1.bf16.msra.mxu0 %v400
      %471 = vmatprep.subr.bf16.mxu0 0
      %472 = vmatpush1.bf16.msra.mxu0 %v401
      %473 = vmatprep.subr.bf16.mxu0 0
      %474 = vmatpush1.bf16.msra.mxu0 %v402
      %475 = vmatprep.subr.bf16.mxu0 0
      %476 = vmatpush1.bf16.msra.mxu0 %v403
      %477 = vmatprep.subr.bf16.mxu0 0
      %478 = vmatpush1.bf16.msra.mxu0 %v404
      %479 = vmatprep.subr.bf16.mxu0 0
      %480 = vmatpush1.bf16.msra.mxu0 0
      %481 = vmatprep.subr.bf16.mxu0 0
      %482 = vmatpush1.bf16.msra.mxu0 0
      %483 = vmatprep.subr.bf16.mxu0 0
      %484 = vmatpush1.bf16.msra.mxu0 0
      %485 = vmatprep.subr.bf16.mxu0 0
      %486 = vmatpush1.bf16.msra.mxu0 0
      %487 = vmatprep.subr.bf16.mxu0 0
      %488 = vmatpush1.bf16.msra.mxu0 0
      %489 = vmatprep.subr.bf16.mxu0 0
      %490 = vmatpush1.bf16.msra.mxu0 0
      %491 = vmatprep.subr.bf16.mxu0 0
      %492 = vmatpush1.bf16.msra.mxu0 0
      %493 = vmatprep.subr.bf16.mxu0 0
      %494 = vmatpush1.bf16.msra.mxu0 0
      %495 = vmatprep.mubr.bf16.mxu0 0
      %496 = vmatmul.mubr.bf16.gmra.mrb[0].mxu0 %v455
      %v497 = vpop.f32.mrb[0].mxu0
      %v498 = vadd.f32 0.0, %v497
      %v499 = vpop.f32.mrb[0].mxu0
      %v500 = vpop.f32.mrb[0].mxu0
      %v501 = vadd.f32 0.0, %v500
      %v502 = vpop.f32.mrb[0].mxu0
      %503 = vmatprep.mubr.bf16.mxu0 0
      %504 = vmatmul.mubr.bf16.gmra.mrb[0].mxu0 %v456
      %v505 = vpop.f32.mrb[0].mxu0
      %v506 = vadd.f32 0.0, %v505
      %v507 = vpop.f32.mrb[0].mxu0
      %v508 = vpop.f32.mrb[0].mxu0
      %v509 = vadd.f32 0.0, %v508
      %v510 = vpop.f32.mrb[0].mxu0
      %511 = vmatprep.mubr.bf16.mxu0 0
      %512 = vmatmul.mubr.bf16.gmra.mrb[0].mxu0 %v457
      %v513 = vpop.f32.mrb[0].mxu0
      %v514 = vadd.f32 0.0, %v513
      %v515 = vpop.f32.mrb[0].mxu0
      %v516 = vpop.f32.mrb[0].mxu0
      %v517 = vadd.f32 0.0, %v516
      %v518 = vpop.f32.mrb[0].mxu0
      %519 = vmatprep.mubr.bf16.mxu0 0
      %520 = vmatmul.mubr.bf16.gmra.mrb[0].mxu0 %v458
      %v521 = vpop.f32.mrb[0].mxu0
      %v522 = vadd.f32 0.0, %v521
      %v523 = vpop.f32.mrb[0].mxu0
      %v524 = vpop.f32.mrb[0].mxu0
      %v525 = vadd.f32 0.0, %v524
      %v526 = vpop.f32.mrb[0].mxu0
      %527 = vmatprep.mubr.bf16.mxu0 0
      %528 = vmatmul.mubr.bf16.gmra.mrb[0].mxu0 %v459
      %v529 = vpop.f32.mrb[0].mxu0
      %v530 = vadd.f32 0.0, %v529
      %v531 = vpop.f32.mrb[0].mxu0
      %v532 = vpop.f32.mrb[0].mxu0
      %v533 = vadd.f32 0.0, %v532
      %v534 = vpop.f32.mrb[0].mxu0
      %535 = vmatprep.mubr.bf16.mxu0 0
      %536 = vmatmul.mubr.bf16.gmra.mrb[0].mxu0 %v460
      %v537 = vpop.f32.mrb[0].mxu0
      %v538 = vadd.f32 0.0, %v537
      %v539 = vpop.f32.mrb[0].mxu0
      %v540 = vpop.f32.mrb[0].mxu0
      %v541 = vadd.f32 0.0, %v540
      %v542 = vpop.f32.mrb[0].mxu0
      %543 = vmatprep.mubr.bf16.mxu0 0
      %544 = vmatmul.mubr.bf16.gmra.mrb[0].mxu0 %v461
      %v545 = vpop.f32.mrb[0].mxu0
      %v546 = vadd.f32 0.0, %v545
      %v547 = vpop.f32.mrb[0].mxu0
      %v548 = vpop.f32.mrb[0].mxu0
      %v549 = vadd.f32 0.0, %v548
      %v550 = vpop.f32.mrb[0].mxu0
      %551 = vmatprep.mubr.bf16.mxu0 0
      %552 = vmatmul.mubr.bf16.gmra.mrb[0].mxu0 %v462
      %v553 = vpop.f32.mrb[0].mxu0
      %v554 = vadd.f32 0.0, %v553
      %v555 = vpop.f32.mrb[0].mxu0
      %v556 = vpop.f32.mrb[0].mxu0
      %v557 = vadd.f32 0.0, %v556
      %v558 = vpop.f32.mrb[0].mxu0
      %559 = vdwg.mxu0
      %v560 = vpack.c.bf16 %v501, %v498
      %v561 = vpack.c.bf16 %v509, %v506
      %v562 = vpack.c.bf16 %v517, %v514
      %v563 = vpack.c.bf16 %v525, %v522
      %v564 = vpack.c.bf16 %v533, %v530
      %v565 = vpack.c.bf16 %v541, %v538
      %v566 = vpack.c.bf16 %v549, %v546
      %v567 = vpack.c.bf16 %v557, %v554
      %v584 = vunpack.c.l.b16 %v418
      %v585 = vunpack.c.l.b16 %v419
      %v586 = vunpack.c.l.b16 %v420
      %v587 = vunpack.c.l.b16 %v421
      %v588 = vunpack.c.l.b16 %v422
      %v589 = vunpack.c.l.b16 %v423
      %v590 = vunpack.c.l.b16 %v424
      %v591 = vunpack.c.l.b16 %v425
      %v592 = vunpack.c.l.b16 %v426
      %v593 = vunpack.c.l.b16 %v427
      %v594 = vunpack.c.l.b16 %v428
      %v595 = vunpack.c.l.b16 %v429
      %v596 = vunpack.c.l.b16 %v430
      %v597 = vunpack.c.l.b16 %v431
      %v598 = vunpack.c.l.b16 %v432
      %v599 = vunpack.c.l.b16 %v433
      %v600 = vpack.c.b16 %v585, %v584
      %v601 = vpack.c.b16 %v587, %v586
      %v602 = vpack.c.b16 %v589, %v588
      %v603 = vpack.c.b16 %v591, %v590
      %v604 = vpack.c.b16 %v593, %v592
      %v605 = vpack.c.b16 %v595, %v594
      %v606 = vpack.c.b16 %v597, %v596
      %v607 = vpack.c.b16 %v599, %v598
      %616 = vmatprep.subr.bf16.mxu0 0
      %617 = vmatpush1.bf16.msra.mxu0 %v600
      %618 = vmatprep.subr.bf16.mxu0 0
      %619 = vmatpush1.bf16.msra.mxu0 %v601
      %620 = vmatprep.subr.bf16.mxu0 0
      %621 = vmatpush1.bf16.msra.mxu0 %v602
      %622 = vmatprep.subr.bf16.mxu0 0
      %623 = vmatpush1.bf16.msra.mxu0 %v603
      %624 = vmatprep.subr.bf16.mxu0 0
      %625 = vmatpush1.bf16.msra.mxu0 %v604
      %626 = vmatprep.subr.bf16.mxu0 0
      %627 = vmatpush1.bf16.msra.mxu0 %v605
      %628 = vmatprep.subr.bf16.mxu0 0
      %629 = vmatpush1.bf16.msra.mxu0 %v606
      %630 = vmatprep.subr.bf16.mxu0 0
      %631 = vmatpush1.bf16.msra.mxu0 %v607
      %632 = vmatprep.subr.bf16.mxu0 0
      %633 = vmatpush1.bf16.msra.mxu0 0
      %634 = vmatprep.subr.bf16.mxu0 0
      %635 = vmatpush1.bf16.msra.mxu0 0
      %636 = vmatprep.subr.bf16.mxu0 0
      %637 = vmatpush1.bf16.msra.mxu0 0
      %638 = vmatprep.subr.bf16.mxu0 0
      %639 = vmatpush1.bf16.msra.mxu0 0
      %640 = vmatprep.subr.bf16.mxu0 0
      %641 = vmatpush1.bf16.msra.mxu0 0
      %642 = vmatprep.subr.bf16.mxu0 0
      %643 = vmatpush1.bf16.msra.mxu0 0
      %644 = vmatprep.subr.bf16.mxu0 0
      %645 = vmatpush1.bf16.msra.mxu0 0
      %646 = vmatprep.subr.bf16.mxu0 0
      %647 = vmatpush1.bf16.msra.mxu0 0
      %648 = vmatprep.mubr.bf16.mxu0 0
      %649 = vmatmul.mubr.bf16.gmra.mrb[0].mxu0 %v560
      %v650 = vpop.f32.mrb[0].mxu0
      %v651 = vadd.f32 0.0, %v650
      %v652 = vpop.f32.mrb[0].mxu0
      %v653 = vpop.f32.mrb[0].mxu0
      %v654 = vadd.f32 0.0, %v653
      %v655 = vpop.f32.mrb[0].mxu0
      %656 = vmatprep.mubr.bf16.mxu0 0
      %657 = vmatmul.mubr.bf16.gmra.mrb[0].mxu0 %v561
      %v658 = vpop.f32.mrb[0].mxu0
      %v659 = vadd.f32 0.0, %v658
      %v660 = vpop.f32.mrb[0].mxu0
      %v661 = vpop.f32.mrb[0].mxu0
      %v662 = vadd.f32 0.0, %v661
      %v663 = vpop.f32.mrb[0].mxu0
      %664 = vmatprep.mubr.bf16.mxu0 0
      %665 = vmatmul.mubr.bf16.gmra.mrb[0].mxu0 %v562
      %v666 = vpop.f32.mrb[0].mxu0
      %v667 = vadd.f32 0.0, %v666
      %v668 = vpop.f32.mrb[0].mxu0
      %v669 = vpop.f32.mrb[0].mxu0
      %v670 = vadd.f32 0.0, %v669
      %v671 = vpop.f32.mrb[0].mxu0
      %672 = vmatprep.mubr.bf16.mxu0 0
      %673 = vmatmul.mubr.bf16.gmra.mrb[0].mxu0 %v563
      %v674 = vpop.f32.mrb[0].mxu0
      %v675 = vadd.f32 0.0, %v674
      %v676 = vpop.f32.mrb[0].mxu0
      %v677 = vpop.f32.mrb[0].mxu0
      %v678 = vadd.f32 0.0, %v677
      %v679 = vpop.f32.mrb[0].mxu0
      %680 = vmatprep.mubr.bf16.mxu0 0
      %681 = vmatmul.mubr.bf16.gmra.mrb[0].mxu0 %v564
      %v682 = vpop.f32.mrb[0].mxu0
      %v683 = vadd.f32 0.0, %v682
      %v684 = vpop.f32.mrb[0].mxu0
      %v685 = vpop.f32.mrb[0].mxu0
      %v686 = vadd.f32 0.0, %v685
      %v687 = vpop.f32.mrb[0].mxu0
      %688 = vmatprep.mubr.bf16.mxu0 0
      %689 = vmatmul.mubr.bf16.gmra.mrb[0].mxu0 %v565
      %v690 = vpop.f32.mrb[0].mxu0
      %v691 = vadd.f32 0.0, %v690
      %v692 = vpop.f32.mrb[0].mxu0
      %v693 = vpop.f32.mrb[0].mxu0
      %v694 = vadd.f32 0.0, %v693
      %v695 = vpop.f32.mrb[0].mxu0
      %696 = vmatprep.mubr.bf16.mxu0 0
      %697 = vmatmul.mubr.bf16.gmra.mrb[0].mxu0 %v566
      %v698 = vpop.f32.mrb[0].mxu0
      %v699 = vadd.f32 0.0, %v698
      %v700 = vpop.f32.mrb[0].mxu0
      %v701 = vpop.f32.mrb[0].mxu0
      %v702 = vadd.f32 0.0, %v701
      %v703 = vpop.f32.mrb[0].mxu0
      %704 = vmatprep.mubr.bf16.mxu0 0
      %705 = vmatmul.mubr.bf16.gmra.mrb[0].mxu0 %v567
      %v706 = vpop.f32.mrb[0].mxu0
      %v707 = vadd.f32 0.0, %v706
      %v708 = vpop.f32.mrb[0].mxu0
      %v709 = vpop.f32.mrb[0].mxu0
      %v710 = vadd.f32 0.0, %v709
      %v711 = vpop.f32.mrb[0].mxu0
      %712 = vdwg.mxu0
      %v713 = vld [vmem:[%s286] sm:$0xff]
      %v714 = vld [vmem:[%s286 + $0x8] sm:$0xff]
      %v715 = vld [vmem:[%s286 + $0x10] sm:$0xff]
      %v716 = vld [vmem:[%s286 + $0x18] sm:$0xff]
      %v717 = vld [vmem:[%s286 + $0x20] sm:$0xff]
      %v718 = vld [vmem:[%s286 + $0x28] sm:$0xff]
      %v719 = vld [vmem:[%s286 + $0x30] sm:$0xff]
      %v720 = vld [vmem:[%s286 + $0x38] sm:$0xff]
      %v721 = vld [vmem:[%s286 + $0x40] sm:$0xff]
      %v722 = vld [vmem:[%s286 + $0x48] sm:$0xff]
      %v723 = vld [vmem:[%s286 + $0x50] sm:$0xff]
      %v724 = vld [vmem:[%s286 + $0x58] sm:$0xff]
      %v725 = vld [vmem:[%s286 + $0x60] sm:$0xff]
      %v726 = vld [vmem:[%s286 + $0x68] sm:$0xff]
      %v727 = vld [vmem:[%s286 + $0x70] sm:$0xff]
      %v728 = vld [vmem:[%s286 + $0x78] sm:$0xff]
      %730 = vset.pattern.permute.xlu0 0
      %731 = vperm.xlu0 %730, %v713
      %v732 = vpop.permute.xlu0 %731
      %735 = vset.pattern.permute.xlu0 0
      %736 = vperm.xlu0 %735, %v714
      %v737 = vpop.permute.xlu0 %736
      %740 = vset.pattern.permute.xlu0 0
      %741 = vperm.xlu0 %740, %v715
      %v742 = vpop.permute.xlu0 %741
      %745 = vset.pattern.permute.xlu0 0
      %746 = vperm.xlu0 %745, %v716
      %v747 = vpop.permute.xlu0 %746
      %750 = vset.pattern.permute.xlu0 0
      %751 = vperm.xlu0 %750, %v717
      %v752 = vpop.permute.xlu0 %751
      %755 = vset.pattern.permute.xlu0 0
      %756 = vperm.xlu0 %755, %v718
      %v757 = vpop.permute.xlu0 %756
      %760 = vset.pattern.permute.xlu0 0
      %761 = vperm.xlu0 %760, %v719
      %v762 = vpop.permute.xlu0 %761
      %765 = vset.pattern.permute.xlu0 0
      %766 = vperm.xlu0 %765, %v720
      %v767 = vpop.permute.xlu0 %766
      %770 = vset.pattern.permute.xlu0 0
      %771 = vperm.xlu0 %770, %v721
      %v772 = vpop.permute.xlu0 %771
      %775 = vset.pattern.permute.xlu0 0
      %776 = vperm.xlu0 %775, %v722
      %v777 = vpop.permute.xlu0 %776
      %780 = vset.pattern.permute.xlu0 0
      %781 = vperm.xlu0 %780, %v723
      %v782 = vpop.permute.xlu0 %781
      %785 = vset.pattern.permute.xlu0 0
      %786 = vperm.xlu0 %785, %v724
      %v787 = vpop.permute.xlu0 %786
      %790 = vset.pattern.permute.xlu0 0
      %791 = vperm.xlu0 %790, %v725
      %v792 = vpop.permute.xlu0 %791
      %795 = vset.pattern.permute.xlu0 0
      %796 = vperm.xlu0 %795, %v726
      %v797 = vpop.permute.xlu0 %796
      %800 = vset.pattern.permute.xlu0 0
      %801 = vperm.xlu0 %800, %v727
      %v802 = vpop.permute.xlu0 %801
      %805 = vset.pattern.permute.xlu0 0
      %806 = vperm.xlu0 %805, %v728
      %v807 = vpop.permute.xlu0 %806
      %v809 = vmul.f32 %v732, %v651
      %v810 = vmul.f32 %v737, %v654
      %v811 = vmul.f32 %v742, %v659
      %v812 = vmul.f32 %v747, %v662
      %v813 = vmul.f32 %v752, %v667
      %v814 = vmul.f32 %v757, %v670
      %v815 = vmul.f32 %v762, %v675
      %v816 = vmul.f32 %v767, %v678
      %v817 = vmul.f32 %v772, %v683
      %v818 = vmul.f32 %v777, %v686
      %v819 = vmul.f32 %v782, %v691
      %v820 = vmul.f32 %v787, %v694
      %v821 = vmul.f32 %v792, %v699
      %v822 = vmul.f32 %v797, %v702
      %v823 = vmul.f32 %v802, %v707
      %v824 = vmul.f32 %v807, %v710
      %v841 = vunpack.c.l.b16 %v434
      %v842 = vunpack.c.l.b16 %v435
      %v843 = vunpack.c.l.b16 %v436
      %v844 = vunpack.c.l.b16 %v437
      %v845 = vunpack.c.l.b16 %v438
      %v846 = vunpack.c.l.b16 %v439
      %v847 = vunpack.c.l.b16 %v440
      %v848 = vunpack.c.l.b16 %v441
      %v849 = vunpack.c.l.b16 %v442
      %v850 = vunpack.c.l.b16 %v443
      %v851 = vunpack.c.l.b16 %v444
      %v852 = vunpack.c.l.b16 %v445
      %v853 = vunpack.c.l.b16 %v446
      %v854 = vunpack.c.l.b16 %v447
      %v855 = vunpack.c.l.b16 %v448
      %v856 = vunpack.c.l.b16 %v449
      %v857 = vpack.c.b16 %v842, %v841
      %v858 = vpack.c.b16 %v844, %v843
      %v859 = vpack.c.b16 %v846, %v845
      %v860 = vpack.c.b16 %v848, %v847
      %v861 = vpack.c.b16 %v850, %v849
      %v862 = vpack.c.b16 %v852, %v851
      %v863 = vpack.c.b16 %v854, %v853
      %v864 = vpack.c.b16 %v856, %v855
      %873 = vmatprep.subr.bf16.mxu0 0
      %874 = vmatpush1.bf16.msra.mxu0 %v857
      %875 = vmatprep.subr.bf16.mxu0 0
      %876 = vmatpush1.bf16.msra.mxu0 %v858
      %877 = vmatprep.subr.bf16.mxu0 0
      %878 = vmatpush1.bf16.msra.mxu0 %v859
      %879 = vmatprep.subr.bf16.mxu0 0
      %880 = vmatpush1.bf16.msra.mxu0 %v860
      %881 = vmatprep.subr.bf16.mxu0 0
      %882 = vmatpush1.bf16.msra.mxu0 %v861
      %883 = vmatprep.subr.bf16.mxu0 0
      %884 = vmatpush1.bf16.msra.mxu0 %v862
      %885 = vmatprep.subr.bf16.mxu0 0
      %886 = vmatpush1.bf16.msra.mxu0 %v863
      %887 = vmatprep.subr.bf16.mxu0 0
      %888 = vmatpush1.bf16.msra.mxu0 %v864
      %889 = vmatprep.subr.bf16.mxu0 0
      %890 = vmatpush1.bf16.msra.mxu0 0
      %891 = vmatprep.subr.bf16.mxu0 0
      %892 = vmatpush1.bf16.msra.mxu0 0
      %893 = vmatprep.subr.bf16.mxu0 0
      %894 = vmatpush1.bf16.msra.mxu0 0
      %895 = vmatprep.subr.bf16.mxu0 0
      %896 = vmatpush1.bf16.msra.mxu0 0
      %897 = vmatprep.subr.bf16.mxu0 0
      %898 = vmatpush1.bf16.msra.mxu0 0
      %899 = vmatprep.subr.bf16.mxu0 0
      %900 = vmatpush1.bf16.msra.mxu0 0
      %901 = vmatprep.subr.bf16.mxu0 0
      %902 = vmatpush1.bf16.msra.mxu0 0
      %903 = vmatprep.subr.bf16.mxu0 0
      %904 = vmatpush1.bf16.msra.mxu0 0
      %905 = vmatprep.mubr.bf16.mxu0 0
      %906 = vmatmul.mubr.bf16.gmra.mrb[0].mxu0 %v410
      %v907 = vpop.f32.mrb[0].mxu0
      %v908 = vadd.f32 %v809, %v907
      %v909 = vpop.f32.mrb[0].mxu0
      %v910 = vpop.f32.mrb[0].mxu0
      %v911 = vadd.f32 %v810, %v910
      %v912 = vpop.f32.mrb[0].mxu0
      %913 = vmatprep.mubr.bf16.mxu0 0
      %914 = vmatmul.mubr.bf16.gmra.mrb[0].mxu0 %v411
      %v915 = vpop.f32.mrb[0].mxu0
      %v916 = vadd.f32 %v811, %v915
      %v917 = vpop.f32.mrb[0].mxu0
      %v918 = vpop.f32.mrb[0].mxu0
      %v919 = vadd.f32 %v812, %v918
      %v920 = vpop.f32.mrb[0].mxu0
      %921 = vmatprep.mubr.bf16.mxu0 0
      %922 = vmatmul.mubr.bf16.gmra.mrb[0].mxu0 %v412
      %v923 = vpop.f32.mrb[0].mxu0
      %v924 = vadd.f32 %v813, %v923
      %v925 = vpop.f32.mrb[0].mxu0
      %v926 = vpop.f32.mrb[0].mxu0
      %v927 = vadd.f32 %v814, %v926
      %v928 = vpop.f32.mrb[0].mxu0
      %929 = vmatprep.mubr.bf16.mxu0 0
      %930 = vmatmul.mubr.bf16.gmra.mrb[0].mxu0 %v413
      %v931 = vpop.f32.mrb[0].mxu0
      %v932 = vadd.f32 %v815, %v931
      %v933 = vpop.f32.mrb[0].mxu0
      %v934 = vpop.f32.mrb[0].mxu0
      %v935 = vadd.f32 %v816, %v934
      %v936 = vpop.f32.mrb[0].mxu0
      %937 = vmatprep.mubr.bf16.mxu0 0
      %938 = vmatmul.mubr.bf16.gmra.mrb[0].mxu0 %v414
      %v939 = vpop.f32.mrb[0].mxu0
      %v940 = vadd.f32 %v817, %v939
      %v941 = vpop.f32.mrb[0].mxu0
      %v942 = vpop.f32.mrb[0].mxu0
      %v943 = vadd.f32 %v818, %v942
      %v944 = vpop.f32.mrb[0].mxu0
      %945 = vmatprep.mubr.bf16.mxu0 0
      %946 = vmatmul.mubr.bf16.gmra.mrb[0].mxu0 %v415
      %v947 = vpop.f32.mrb[0].mxu0
      %v948 = vadd.f32 %v819, %v947
      %v949 = vpop.f32.mrb[0].mxu0
      %v950 = vpop.f32.mrb[0].mxu0
      %v951 = vadd.f32 %v820, %v950
      %v952 = vpop.f32.mrb[0].mxu0
      %953 = vmatprep.mubr.bf16.mxu0 0
      %954 = vmatmul.mubr.bf16.gmra.mrb[0].mxu0 %v416
      %v955 = vpop.f32.mrb[0].mxu0
      %v956 = vadd.f32 %v821, %v955
      %v957 = vpop.f32.mrb[0].mxu0
      %v958 = vpop.f32.mrb[0].mxu0
      %v959 = vadd.f32 %v822, %v958
      %v960 = vpop.f32.mrb[0].mxu0
      %961 = vmatprep.mubr.bf16.mxu0 0
      %962 = vmatmul.mubr.bf16.gmra.mrb[0].mxu0 %v417
      %v963 = vpop.f32.mrb[0].mxu0
      %v964 = vadd.f32 %v823, %v963
      %v965 = vpop.f32.mrb[0].mxu0
      %v966 = vpop.f32.mrb[0].mxu0
      %v967 = vadd.f32 %v824, %v966
      %v968 = vpop.f32.mrb[0].mxu0
      %969 = vdwg.mxu0
      %v971 = vlaneseq
      %v972 = vshrl.u32 %v971, 7
      %v973 = vsub.s32 0, %v972
      %v974 = vrot.slane %v450, %v973
      %v976 = vadd.f32 %v908, %v974
      %v977 = vadd.f32 %v911, %v974
      %v978 = vadd.f32 %v916, %v974
      %v979 = vadd.f32 %v919, %v974
      %v980 = vadd.f32 %v924, %v974
      %v981 = vadd.f32 %v927, %v974
      %v982 = vadd.f32 %v932, %v974
      %v983 = vadd.f32 %v935, %v974
      %v984 = vadd.f32 %v940, %v974
      %v985 = vadd.f32 %v943, %v974
      %v986 = vadd.f32 %v948, %v974
      %v987 = vadd.f32 %v951, %v974
      %v988 = vadd.f32 %v956, %v974
      %v989 = vadd.f32 %v959, %v974
      %v990 = vadd.f32 %v964, %v974
      %v991 = vadd.f32 %v967, %v974
      %v992 = vmax.f32 %v976, 0.0
      %v993 = vmax.f32 %v977, 0.0
      %v994 = vmax.f32 %v978, 0.0
      %v995 = vmax.f32 %v979, 0.0
      %v996 = vmax.f32 %v980, 0.0
      %v997 = vmax.f32 %v981, 0.0
      %v998 = vmax.f32 %v982, 0.0
      %v999 = vmax.f32 %v983, 0.0
      %v1000 = vmax.f32 %v984, 0.0
      %v1001 = vmax.f32 %v985, 0.0
      %v1002 = vmax.f32 %v986, 0.0
      %v1003 = vmax.f32 %v987, 0.0
      %v1004 = vmax.f32 %v988, 0.0
      %v1005 = vmax.f32 %v989, 0.0
      %v1006 = vmax.f32 %v990, 0.0
      %v1007 = vmax.f32 %v991, 0.0
      %v1008 = vpack.c.bf16 %v993, %v992
      %v1009 = vpack.c.bf16 %v995, %v994
      %v1010 = vpack.c.bf16 %v997, %v996
      %v1011 = vpack.c.bf16 %v999, %v998
      %v1012 = vpack.c.bf16 %v1001, %v1000
      %v1013 = vpack.c.bf16 %v1003, %v1002
      %v1014 = vpack.c.bf16 %v1005, %v1004
      %v1015 = vpack.c.bf16 %v1007, %v1006
      %s1016 = smul.u32 %s393, 8
      %s1017 = sadd.s32 %s405, %s1016
      %s1018 = smul.addr %s1017, 8
      %s1019 = scalar_lea.vmem [#allocation2], %s1018
      %1020 = vst [vmem:[%s1019] sm:$0xff] %v1008
      %1021 = vst [vmem:[%s1019 + $0x8] sm:$0xff] %v1009
      %1022 = vst [vmem:[%s1019 + $0x10] sm:$0xff] %v1010
      %1023 = vst [vmem:[%s1019 + $0x18] sm:$0xff] %v1011
      %1024 = vst [vmem:[%s1019 + $0x20] sm:$0xff] %v1012
      %1025 = vst [vmem:[%s1019 + $0x28] sm:$0xff] %v1013
      %1026 = vst [vmem:[%s1019 + $0x30] sm:$0xff] %v1014
      %1027 = vst [vmem:[%s1019 + $0x38] sm:$0xff] %v1015
      %p1028 = scmp.eq.s32.totalorder %s21, 1
      // Predicated region
      $region79: #{gcn_forward.1} parent=39 // pred_check
        %p1029 = pneg %p1028
      $region80: #{gcn_forward.1} parent=39 // pred_check_branch
        %1031 = sbr.rel (%p1029) target = $region82
      $region81: #{gcn_forward.1} parent=39 // pred_region
        %s1032 = scalar_lea.vmem %s6, %s302
        %1033 = vst [vmem:[%s1032] sm:$0xff] %v992
        %1034 = vst [vmem:[%s1032 + $0x8] sm:$0xff] %v993
        %1035 = vst [vmem:[%s1032 + $0x10] sm:$0xff] %v994
        %1036 = vst [vmem:[%s1032 + $0x18] sm:$0xff] %v995
        %1037 = vst [vmem:[%s1032 + $0x20] sm:$0xff] %v996
        %1038 = vst [vmem:[%s1032 + $0x28] sm:$0xff] %v997
        %1039 = vst [vmem:[%s1032 + $0x30] sm:$0xff] %v998
        %1040 = vst [vmem:[%s1032 + $0x38] sm:$0xff] %v999
        %1041 = vst [vmem:[%s1032 + $0x40] sm:$0xff] %v1000
        %1042 = vst [vmem:[%s1032 + $0x48] sm:$0xff] %v1001
        %1043 = vst [vmem:[%s1032 + $0x50] sm:$0xff] %v1002
        %1044 = vst [vmem:[%s1032 + $0x58] sm:$0xff] %v1003
        %1045 = vst [vmem:[%s1032 + $0x60] sm:$0xff] %v1004
        %1046 = vst [vmem:[%s1032 + $0x68] sm:$0xff] %v1005
        %1047 = vst [vmem:[%s1032 + $0x70] sm:$0xff] %v1006
        %1048 = vst [vmem:[%s1032 + $0x78] sm:$0xff] %v1007
      $region82: #{gcn_forward.1} parent=39 // pred_fallthru
        _
      // Predicated region
      $region83: #{gcn_forward.1} parent=39 // pred_check
        %p1049 = pneg %p172
      $region84: #{gcn_forward.1} parent=39 // pred_check_branch
        %1051 = sbr.rel (%p1049) target = $region86
      $region85: #{gcn_forward.1} parent=39 // pred_region
        _
      $region86: #{gcn_forward.1} parent=39 // pred_fallthru
        _
      // Predicated region
      $region87: #{gcn_forward.1} parent=39 // pred_check
        %p1052 = pneg %p172
      $region88: #{gcn_forward.1} parent=39 // pred_check_branch
        %1054 = sbr.rel (%p1052) target = $region90
      $region89: #{gcn_forward.1} parent=39 // pred_region
        _
      $region90: #{gcn_forward.1} parent=39 // pred_fallthru
        _
    $region40: #{gcn_forward.1} parent=5 // pred_fallthru
      _
    %p1055 = scmp.le.s32.totalorder 2, %s12
    // Predicated region
    $region91: #{gcn_forward.1} parent=5 // pred_check
      %p1056 = pneg %p1055
    $region92: #{gcn_forward.1} parent=5 // pred_check_branch
      %1058 = sbr.rel (%p1056) target = $region94
    $region93: #{gcn_forward.1} parent=5 // pred_region
      %s1059 = ssub.s32 %s12, 2
    $region94: #{gcn_forward.1} parent=5 // pred_fallthru
      _
  $region6: #{gcn_forward.1} parent=0 // loop_footer
    %s16 = sadd.s32 1, %s12
  $region7: #{gcn_forward.1} parent=0 // loop_footer_branch
    %11 = sbr.rel target = $region3
  $region8: #{gcn_forward.1} parent=0 // loop_exit
    _
  %1060 = vsyncmov [#allocation3]
  %s1061 = vpop.sfrf %1060
  %p1062 = scmp.eq.s32.totalorder %s1061, 0
  %p1063 = pneg %p1062
  %1065 = shalt.err (%p1063)

</llo_original>
